<compile_context>
chip_gen: v7x
topology: tpu7x:2x2x1
jax: 0.10.0
libtpu: 0.0.40
codegen_flags: <defaults>
</compile_context>

<pallas_src>
import functools

import jax
import jax.numpy as jnp
from jax.experimental import pallas as pl
from jax.experimental.pallas import tpu as pltpu


def _linear_edge_kernel(x_ref, w_ref, b_ref, o_ref):
    # x_ref : (TR, K)   lane-dense tile of folded edge features
    # w_ref : (K, N)    block-diagonal folded weight (VMEM-resident)
    # b_ref : (1, N)    folded bias (VMEM-resident)
    # o_ref : (TR, N)
    acc = jnp.dot(x_ref[...], w_ref[...], preferred_element_type=jnp.float32)
    o_ref[...] = (acc + b_ref[...]).astype(o_ref.dtype)


@functools.partial(jax.jit, static_argnames=("tile_rows",))
def linear_edge_encoder(edge_attr, weight, bias, *, tile_rows=2048):
    """edge_attr: (E, in_dim); weight: (emb_dim, in_dim); bias: (emb_dim,)."""
    E, in_dim = edge_attr.shape
    emb_dim = weight.shape[0]

    # How many edges share one 128-lane row (16 for in_dim=8).
    fold = 128 // in_dim if (in_dim <= 128 and 128 % in_dim == 0) else 1

    # Pad the edge count to a multiple of `fold` only if needed (cheap; the
    # common aligned case is zero-copy).
    E_pad = pl.cdiv(E, fold) * fold
    x = edge_attr
    if E_pad != E:
        x = jnp.pad(x, ((0, E_pad - E), (0, 0)))

    rows = E_pad // fold
    k = fold * in_dim            # 128 when folded
    n = fold * emb_dim           # e.g. 512 for in_dim=8, emb_dim=32

    x_f = x.reshape(rows, k)     # free, contiguous row-major reshape

    wt = weight.T                # (in_dim, emb_dim)
    if fold > 1:
        # Block-diagonal: group g maps x[:, g*in:(g+1)*in] -> y[:, g*emb:(g+1)*emb].
        w_f = jnp.kron(jnp.eye(fold, dtype=wt.dtype), wt)   # (k, n)
        b_f = jnp.tile(bias, fold).reshape(1, n)
    else:
        w_f = wt
        b_f = bias.reshape(1, n)

    # Block row dim must be a multiple of 8 or equal the full dim:
    # tile_rows defaults to 2048 (%8 == 0); small inputs use the full extent.
    tr = min(tile_rows, rows)
    grid_r = pl.cdiv(rows, tr)   # partial last block is write-masked by Pallas

    out = pl.pallas_call(
        _linear_edge_kernel,
        out_shape=jax.ShapeDtypeStruct((rows, n), edge_attr.dtype),
        grid_spec=pltpu.PrefetchScalarGridSpec(
            num_scalar_prefetch=0,
            grid=(grid_r,),
            in_specs=[
                pl.BlockSpec((tr, k), lambda i: (i, 0)),
                pl.BlockSpec((k, n), lambda i: (0, 0)),   # VMEM-resident weight
                pl.BlockSpec((1, n), lambda i: (0, 0)),   # VMEM-resident bias
            ],
            out_specs=pl.BlockSpec((tr, n), lambda i: (i, 0)),
        ),
        compiler_params=pltpu.CompilerParams(
            dimension_semantics=("parallel",),  # shards the 1-D grid on v7x's 2 TCs
        ),
    )(x_f, w_f, b_f)

    out = out.reshape(E_pad, emb_dim)  # free reshape back to per-edge layout
    if E_pad != E:
        out = out[:E]
    return out


if __name__ == "__main__":
    # Config (synthetic): RWSE kernel times -> in_dim = 8, emb_dim = 32.
    in_dim = 8
    emb_dim = 32

    key = jax.random.PRNGKey(0)
    k_x1, k_x2, k_w, k_b = jax.random.split(key, 4)

    # Deterministic parameter init (matches nn.Linear's U(-1/sqrt(in), 1/sqrt(in))).
    bound = 1.0 / jnp.sqrt(jnp.float32(in_dim))
    weight = jax.random.uniform(k_w, (emb_dim, in_dim), jnp.float32, -bound, bound)
    bias = jax.random.uniform(k_b, (emb_dim,), jnp.float32, -bound, bound)

    # Case 1: E not a multiple of the fold factor (exercises pad/slice path).
    E1 = 200
    x1 = jax.random.normal(k_x1, (E1, in_dim), jnp.float32)
    out1 = jax.block_until_ready(linear_edge_encoder(x1, weight, bias))
    ref1 = x1 @ weight.T + bias
    assert out1.shape == (E1, emb_dim)
    assert jnp.allclose(out1, ref1, atol=1e-4, rtol=1e-4)

    # Case 2: multi-step grid with a partial last block (small tile_rows).
    E2 = 1000
    x2 = jax.random.normal(k_x2, (E2, in_dim), jnp.float32)
    out2 = jax.block_until_ready(linear_edge_encoder(x2, weight, bias, tile_rows=16))
    ref2 = x2 @ weight.T + bias
    assert out2.shape == (E2, emb_dim)
    assert jnp.allclose(out2, ref2, atol=1e-4, rtol=1e-4)

    print("KERNEL_OK")
</pallas_src>

<mosaic_0001>
module attributes {stable_mosaic.version = 11 : i64} {
  func.func @_linear_edge_kernel(%arg0: i32, %arg1: memref<13x128xf32, #tpu.memory_space<vmem>>, %arg2: memref<128x512xf32, #tpu.memory_space<vmem>>, %arg3: memref<1x512xf32, #tpu.memory_space<vmem>>, %arg4: memref<13x512xf32, #tpu.memory_space<vmem>>) attributes {dimension_semantics = [#tpu.dimension_semantics<parallel>], iteration_bounds = array<i64: 1>, scalar_prefetch = 0 : i64, scratch_operands = 0 : i64, tpu.core_type = #tpu.core_type<tc>, window_params = [{transform_indices = @transform_0, window_bounds = array<i64: 13, 128>}, {pipeline_mode = #tpu.pipeline_mode<synchronous>, transform_indices = @transform_1, window_bounds = array<i64: 128, 512>}, {pipeline_mode = #tpu.pipeline_mode<synchronous>, transform_indices = @transform_2, window_bounds = array<i64: 1, 512>}, {transform_indices = @transform_3, window_bounds = array<i64: 13, 512>}]} {
    %c0 = arith.constant 0 : index
    %c0_0 = arith.constant 0 : index
    %0 = vector.load %arg1[%c0, %c0_0] : memref<13x128xf32, #tpu.memory_space<vmem>>, vector<13x128xf32>
    %c0_1 = arith.constant 0 : index
    %c0_2 = arith.constant 0 : index
    %1 = vector.load %arg2[%c0_1, %c0_2] : memref<128x512xf32, #tpu.memory_space<vmem>>, vector<128x512xf32>
    %cst = arith.constant dense<0.000000e+00> : vector<13x512xf32>
    %2 = tpu.matmul %0, %1, %cst {dimension_numbers = #tpu.dot_dimension_numbers<[1], [0], [0], [1], [0, 0, 1, 1], [], []>} : vector<13x128xf32>, vector<128x512xf32>, vector<13x512xf32> -> vector<13x512xf32>
    %c0_3 = arith.constant 0 : index
    %c0_4 = arith.constant 0 : index
    %3 = vector.load %arg3[%c0_3, %c0_4] : memref<1x512xf32, #tpu.memory_space<vmem>>, vector<1x512xf32>
    %4 = vector.broadcast %3 : vector<1x512xf32> to vector<13x512xf32>
    %5 = arith.addf %2, %4 : vector<13x512xf32>
    %c0_5 = arith.constant 0 : index
    %c0_6 = arith.constant 0 : index
    %6 = vector.load %arg4[%c0_5, %c0_6] : memref<13x512xf32, #tpu.memory_space<vmem>>, vector<13x512xf32>
    tpu.vector_store %arg4[%c0_5, %c0_6], %5 {strides = array<i32>} : memref<13x512xf32, #tpu.memory_space<vmem>>, vector<13x512xf32>,
    return
  }
  func.func @transform_0(%arg0: i32) -> (i32, i32) {
    %c0_i32 = arith.constant 0 : i32
    %c0_i32_0 = arith.constant 0 : i32
    return %arg0, %c0_i32 : i32, i32
  }
  func.func @transform_1(%arg0: i32) -> (i32, i32) {
    %c0_i32 = arith.constant 0 : i32
    %c0_i32_0 = arith.constant 0 : i32
    %c0_i32_1 = arith.constant 0 : i32
    return %c0_i32, %c0_i32_0 : i32, i32
  }
  func.func @transform_2(%arg0: i32) -> (i32, i32) {
    %c0_i32 = arith.constant 0 : i32
    %c0_i32_0 = arith.constant 0 : i32
    %c0_i32_1 = arith.constant 0 : i32
    return %c0_i32, %c0_i32_0 : i32, i32
  }
  func.func @transform_3(%arg0: i32) -> (i32, i32) {
    %c0_i32 = arith.constant 0 : i32
    %c0_i32_0 = arith.constant 0 : i32
    return %arg0, %c0_i32 : i32, i32
  }
}

</mosaic_0001>

<llo_original>
// kernel: tile.8
$region0: #{tile.8}
  #allocation0 [shape = 's32[1]{0}', space=sflag, size = 0x4, scoped, tag = 'scoped memory for tile.8']
  %s0 = inlined_call_operand.vmem [shape: f32[32], index: 0, kind: input, shape index: {}]
  %s1 = inlined_call_operand.vmem [shape: f32[16,32], index: 1, kind: output, shape index: {}]
  // Predicated region
  $region2: #{tile.8} parent=0 // pred_check
    _
  $region3: #{tile.8} parent=0 // pred_check_branch
    %3 = sbr.rel (0) target = $region5
  $region4: #{tile.8} parent=0 // pred_region
    _
  $region5: #{tile.8} parent=0 // pred_fallthru
    _
  %v4 = vld [vmem:[%s0] ss:$0 sm:$0xff]
  %5 = vst [vmem:[%s1] sm:$0xff] %v4
  %s6 = scalar_lea.vmem %s1, 8
  %7 = vst [vmem:[%s6] sm:$0xff] %v4

// kernel: tile.9
$region0: #{tile.9}
  %s0 = inlined_call_operand.vmem [shape: f32[16,32], index: 0, kind: input, shape index: {}]
  %s1 = inlined_call_operand.vmem [shape: f32[1,512], index: 1, kind: output, shape index: {}]
  $region1: #{tile.9} parent=0
    #allocation0 [shape = 'u8[16384]{0}', space=vmem, size = 0x4000, scoped, tag = 'scoped mem for output reshape']
    %v2 = vld [vmem:[%s0] ss:$4 sm:$0xf]
    %vm3 = vcmask 261120
    %4 = vst.msk [vmem:[#allocation0] ss:$8 sm:$0xf] %vm3, %v2
    %s5 = scalar_lea.vmem %s0, 3
    %v6 = vld [vmem:[%s5] ss:$4 sm:$0xf]
    %7 = vrot.lane.b32.xlu0 %v6, 96
    %v8 = vpop.permute.xlu0 %7
    %vm9 = vcmask 1048320
    %10 = vst.msk [vmem:[#allocation0] ss:$8 sm:$0xf] %vm9, %v8
    %s11 = scalar_lea.vmem %s0, 2
    %v12 = vld [vmem:[%s11] ss:$4 sm:$0xf]
    %13 = vrot.lane.b32.xlu0 %v12, 64
    %v14 = vpop.permute.xlu0 %13
    %vm15 = vcmask 785920
    %16 = vst.msk [vmem:[#allocation0] ss:$8 sm:$0xf] %vm15, %v14
    %s17 = scalar_lea.vmem %s0, 1
    %v18 = vld [vmem:[%s17] ss:$4 sm:$0xf]
    %19 = vrot.lane.b32.xlu0 %v18, 32
    %v20 = vpop.permute.xlu0 %19
    %vm21 = vcmask 523520
    %22 = vst.msk [vmem:[#allocation0] ss:$8 sm:$0xf] %vm21, %v20
    %s24 = sshllo.u32 0, 1
    %v26 = vld [vmem:[#allocation0] sm:%s24]
    %s27 = sshllo.u32 0, 1
    %28 = vst [vmem:[%s1] sm:%s27] %v26
    %s29 = scalar_lea.vmem [#allocation0], 8
    %v30 = vld [vmem:[%s29] sm:%s24]
    %s31 = sshllo.u32 0, 1
    %s32 = scalar_lea.vmem %s1, 1
    %33 = vst [vmem:[%s32] sm:%s31] %v30
    %s34 = scalar_lea.vmem [#allocation0], 16
    %v35 = vld [vmem:[%s34] sm:%s24]
    %s36 = sshllo.u32 0, 1
    %s37 = smul.addr 1, 2
    %s38 = scalar_lea.vmem %s1, %s37
    %39 = vst [vmem:[%s38] sm:%s36] %v35
    %s40 = scalar_lea.vmem [#allocation0], 24
    %v41 = vld [vmem:[%s40] sm:%s24]
    %s42 = sshllo.u32 0, 1
    %s43 = smul.addr 1, 3
    %s44 = scalar_lea.vmem %s1, %s43
    %45 = vst [vmem:[%s44] sm:%s42] %v41

// kernel: linear_edge_encoder.1
$region0: #{linear_edge_encoder.1}
  #allocation0 [shape = 'u32[]', space=smem, size = 0x4, offset = 0x4, fixed_abs, tag = 'smem constant byte address 0x4 - core index']
  #allocation1 [shape = 'u32[144,128]{1,0:T(1,128)}', space=vmem, size = 0x12000, scoped, tag = 'internal scratch']
  %s0 = inlined_call_operand.vmem [shape: f32[13,128], index: 0, kind: input, shape index: {}]
  %s1 = inlined_call_operand.vmem [shape: f32[128,512], index: 1, kind: input, shape index: {}]
  %s2 = inlined_call_operand.vmem [shape: f32[1,512], index: 2, kind: input, shape index: {}]
  %s3 = inlined_call_operand.vmem [shape: f32[13,512], index: 3, kind: output, shape index: {}]
  %s4 = sld [smem:[#allocation0]]
  $region22: #{linear_edge_encoder.1} parent=0
    _
  %s6 = ssub.s32 1, %s4
  %s7 = scalar_select 0, %s6, %s4
  // Predicated region
  $region2: #{linear_edge_encoder.1} parent=0 // pred_check
    _
  $region3: #{linear_edge_encoder.1} parent=0 // pred_check_branch
    %9 = sbr.rel (0) target = $region5
  $region4: #{linear_edge_encoder.1} parent=0 // pred_region
    _
  $region5: #{linear_edge_encoder.1} parent=0 // pred_fallthru
    _
  // Predicated region
  $region6: #{linear_edge_encoder.1} parent=0 // pred_check
    _
  $region7: #{linear_edge_encoder.1} parent=0 // pred_check_branch
    %11 = sbr.rel (0) target = $region9
  $region8: #{linear_edge_encoder.1} parent=0 // pred_region
    _
  $region9: #{linear_edge_encoder.1} parent=0 // pred_fallthru
    _
  // Predicated region
  $region10: #{linear_edge_encoder.1} parent=0 // pred_check
    _
  $region11: #{linear_edge_encoder.1} parent=0 // pred_check_branch
    %13 = sbr.rel (0) target = $region13
  $region12: #{linear_edge_encoder.1} parent=0 // pred_region
    _
  $region13: #{linear_edge_encoder.1} parent=0 // pred_fallthru
    _
  %v14 = vld [vmem:[%s0] sm:$0xff]
  %v15 = vld [vmem:[%s0 + $0x8] sm:$0x1f]
  %v16 = vld [vmem:[%s1] sm:$0xff]
  %v17 = vld [vmem:[%s1 + $0x8] sm:$0xff]
  %v18 = vld [vmem:[%s1 + $0x10] sm:$0xff]
  %v19 = vld [vmem:[%s1 + $0x18] sm:$0xff]
  %v20 = vld [vmem:[%s1 + $0x20] sm:$0xff]
  %v21 = vld [vmem:[%s1 + $0x28] sm:$0xff]
  %v22 = vld [vmem:[%s1 + $0x30] sm:$0xff]
  %v23 = vld [vmem:[%s1 + $0x38] sm:$0xff]
  %v24 = vld [vmem:[%s1 + $0x40] sm:$0xff]
  %v25 = vld [vmem:[%s1 + $0x48] sm:$0xff]
  %v26 = vld [vmem:[%s1 + $0x50] sm:$0xff]
  %v27 = vld [vmem:[%s1 + $0x58] sm:$0xff]
  %v28 = vld [vmem:[%s1 + $0x60] sm:$0xff]
  %v29 = vld [vmem:[%s1 + $0x68] sm:$0xff]
  %v30 = vld [vmem:[%s1 + $0x70] sm:$0xff]
  %v31 = vld [vmem:[%s1 + $0x78] sm:$0xff]
  %v32 = vld [vmem:[%s1 + $0x80] sm:$0xff]
  %v33 = vld [vmem:[%s1 + $0x88] sm:$0xff]
  %v34 = vld [vmem:[%s1 + $0x90] sm:$0xff]
  %v35 = vld [vmem:[%s1 + $0x98] sm:$0xff]
  %v36 = vld [vmem:[%s1 + $0xa0] sm:$0xff]
  %v37 = vld [vmem:[%s1 + $0xa8] sm:$0xff]
  %v38 = vld [vmem:[%s1 + $0xb0] sm:$0xff]
  %v39 = vld [vmem:[%s1 + $0xb8] sm:$0xff]
  %v40 = vld [vmem:[%s1 + $0xc0] sm:$0xff]
  %v41 = vld [vmem:[%s1 + $0xc8] sm:$0xff]
  %v42 = vld [vmem:[%s1 + $0xd0] sm:$0xff]
  %v43 = vld [vmem:[%s1 + $0xd8] sm:$0xff]
  %v44 = vld [vmem:[%s1 + $0xe0] sm:$0xff]
  %v45 = vld [vmem:[%s1 + $0xe8] sm:$0xff]
  %v46 = vld [vmem:[%s1 + $0xf0] sm:$0xff]
  %v47 = vld [vmem:[%s1 + $0xf8] sm:$0xff]
  %v48 = vld [vmem:[%s1 + $0x100] sm:$0xff]
  %v49 = vld [vmem:[%s1 + $0x108] sm:$0xff]
  %v50 = vld [vmem:[%s1 + $0x110] sm:$0xff]
  %v51 = vld [vmem:[%s1 + $0x118] sm:$0xff]
  %v52 = vld [vmem:[%s1 + $0x120] sm:$0xff]
  %v53 = vld [vmem:[%s1 + $0x128] sm:$0xff]
  %v54 = vld [vmem:[%s1 + $0x130] sm:$0xff]
  %v55 = vld [vmem:[%s1 + $0x138] sm:$0xff]
  %v56 = vld [vmem:[%s1 + $0x140] sm:$0xff]
  %v57 = vld [vmem:[%s1 + $0x148] sm:$0xff]
  %v58 = vld [vmem:[%s1 + $0x150] sm:$0xff]
  %v59 = vld [vmem:[%s1 + $0x158] sm:$0xff]
  %v60 = vld [vmem:[%s1 + $0x160] sm:$0xff]
  %v61 = vld [vmem:[%s1 + $0x168] sm:$0xff]
  %v62 = vld [vmem:[%s1 + $0x170] sm:$0xff]
  %v63 = vld [vmem:[%s1 + $0x178] sm:$0xff]
  %v64 = vld [vmem:[%s1 + $0x180] sm:$0xff]
  %v65 = vld [vmem:[%s1 + $0x188] sm:$0xff]
  %v66 = vld [vmem:[%s1 + $0x190] sm:$0xff]
  %v67 = vld [vmem:[%s1 + $0x198] sm:$0xff]
  %v68 = vld [vmem:[%s1 + $0x1a0] sm:$0xff]
  %v69 = vld [vmem:[%s1 + $0x1a8] sm:$0xff]
  %v70 = vld [vmem:[%s1 + $0x1b0] sm:$0xff]
  %v71 = vld [vmem:[%s1 + $0x1b8] sm:$0xff]
  %v72 = vld [vmem:[%s1 + $0x1c0] sm:$0xff]
  %v73 = vld [vmem:[%s1 + $0x1c8] sm:$0xff]
  %v74 = vld [vmem:[%s1 + $0x1d0] sm:$0xff]
  %v75 = vld [vmem:[%s1 + $0x1d8] sm:$0xff]
  %v76 = vld [vmem:[%s1 + $0x1e0] sm:$0xff]
  %v77 = vld [vmem:[%s1 + $0x1e8] sm:$0xff]
  %v78 = vld [vmem:[%s1 + $0x1f0] sm:$0xff]
  %v79 = vld [vmem:[%s1 + $0x1f8] sm:$0xff]
  %v80 = vld [vmem:[%s2] sm:$0xf]
  %v82 = vlaneseq
  %v83 = vshrl.u32 %v82, 7
  %v84 = vsub.s32 0, %v83
  %v85 = vrot.slane %v80, %v84
  %v86 = vlaneseq
  %v87 = vshrl.u32 %v86, 7
  %v88 = vsub.s32 1, %v87
  %v89 = vrot.slane %v80, %v88
  %v90 = vlaneseq
  %v91 = vshrl.u32 %v90, 7
  %v92 = vsub.s32 2, %v91
  %v93 = vrot.slane %v80, %v92
  %v94 = vlaneseq
  %v95 = vshrl.u32 %v94, 7
  %v96 = vsub.s32 3, %v95
  %v97 = vrot.slane %v80, %v96
  %102 = vmatprep.subr.mxu0 %v17
  %103 = vmatpush1.msra.mxu0 %v16
  %104 = vmatprep.subr.mxu0 %v21
  %105 = vmatpush1.msra.mxu0 %v20
  %106 = vmatprep.subr.mxu0 %v25
  %107 = vmatpush1.msra.mxu0 %v24
  %108 = vmatprep.subr.mxu0 %v29
  %109 = vmatpush1.msra.mxu0 %v28
  %110 = vmatprep.subr.mxu0 %v33
  %111 = vmatpush1.msra.mxu0 %v32
  %112 = vmatprep.subr.mxu0 %v37
  %113 = vmatpush1.msra.mxu0 %v36
  %114 = vmatprep.subr.mxu0 %v41
  %115 = vmatpush1.msra.mxu0 %v40
  %116 = vmatprep.subr.mxu0 %v45
  %117 = vmatpush1.msra.mxu0 %v44
  %118 = vmatprep.subr.mxu0 %v49
  %119 = vmatpush1.msra.mxu0 %v48
  %120 = vmatprep.subr.mxu0 %v53
  %121 = vmatpush1.msra.mxu0 %v52
  %122 = vmatprep.subr.mxu0 %v57
  %123 = vmatpush1.msra.mxu0 %v56
  %124 = vmatprep.subr.mxu0 %v61
  %125 = vmatpush1.msra.mxu0 %v60
  %126 = vmatprep.subr.mxu0 %v65
  %127 = vmatpush1.msra.mxu0 %v64
  %128 = vmatprep.subr.mxu0 %v69
  %129 = vmatpush1.msra.mxu0 %v68
  %130 = vmatprep.subr.mxu0 %v73
  %131 = vmatpush1.msra.mxu0 %v72
  %132 = vmatprep.subr.mxu0 %v77
  %133 = vmatpush1.msra.mxu0 %v76
  %134 = vmatprep.subr.mxu0 0.0
  %135 = vmatpush1.msra.mxu0 0.0
  %136 = vmatprep.subr.mxu0 0.0
  %137 = vmatpush1.msra.mxu0 0.0
  %138 = vmatprep.subr.mxu0 0.0
  %139 = vmatpush1.msra.mxu0 0.0
  %140 = vmatprep.subr.mxu0 0.0
  %141 = vmatpush1.msra.mxu0 0.0
  %142 = vmatprep.subr.mxu0 0.0
  %143 = vmatpush1.msra.mxu0 0.0
  %144 = vmatprep.subr.mxu0 0.0
  %145 = vmatpush1.msra.mxu0 0.0
  %146 = vmatprep.subr.mxu0 0.0
  %147 = vmatpush1.msra.mxu0 0.0
  %148 = vmatprep.subr.mxu0 0.0
  %149 = vmatpush1.msra.mxu0 0.0
  %150 = vmatprep.subr.mxu0 0.0
  %151 = vmatpush1.msra.mxu0 0.0
  %152 = vmatprep.subr.mxu0 0.0
  %153 = vmatpush1.msra.mxu0 0.0
  %154 = vmatprep.subr.mxu0 0.0
  %155 = vmatpush1.msra.mxu0 0.0
  %156 = vmatprep.subr.mxu0 0.0
  %157 = vmatpush1.msra.mxu0 0.0
  %158 = vmatprep.subr.mxu0 0.0
  %159 = vmatpush1.msra.mxu0 0.0
  %160 = vmatprep.subr.mxu0 0.0
  %161 = vmatpush1.msra.mxu0 0.0
  %162 = vmatprep.subr.mxu0 0.0
  %163 = vmatpush1.msra.mxu0 0.0
  %164 = vmatprep.subr.mxu0 0.0
  %165 = vmatpush1.msra.mxu0 0.0
  %166 = vmatprep.mubr.f32.mxu0 0.0
  %167 = vmatmul.mubr.f32.gmra.mrb[0].mxu0 %v14
  %v168 = vpop.f32.mrb[0].mxu0
  %v169 = vadd.f32 %v85, %v168
  %v170 = vpop.f32.mrb[0].mxu0
  %v171 = vadd.f32 %v89, %v170
  %172 = vmatprep.mubr.f32.mxu0 0.0
  %173 = vmatmul.mubr.f32.gmra.mrb[0].mxu0 %v15
  %v174 = vpop.f32.mrb[0].mxu0
  %v175 = vadd.f32 %v85, %v174
  %v176 = vpop.f32.mrb[0].mxu0
  %v177 = vadd.f32 %v89, %v176
  %178 = vdwg.mxu0
  %179 = vmatprep.subr.mxu0 %v19
  %180 = vmatpush1.msra.mxu0 %v18
  %181 = vmatprep.subr.mxu0 %v23
  %182 = vmatpush1.msra.mxu0 %v22
  %183 = vmatprep.subr.mxu0 %v27
  %184 = vmatpush1.msra.mxu0 %v26
  %185 = vmatprep.subr.mxu0 %v31
  %186 = vmatpush1.msra.mxu0 %v30
  %187 = vmatprep.subr.mxu0 %v35
  %188 = vmatpush1.msra.mxu0 %v34
  %189 = vmatprep.subr.mxu0 %v39
  %190 = vmatpush1.msra.mxu0 %v38
  %191 = vmatprep.subr.mxu0 %v43
  %192 = vmatpush1.msra.mxu0 %v42
  %193 = vmatprep.subr.mxu0 %v47
  %194 = vmatpush1.msra.mxu0 %v46
  %195 = vmatprep.subr.mxu0 %v51
  %196 = vmatpush1.msra.mxu0 %v50
  %197 = vmatprep.subr.mxu0 %v55
  %198 = vmatpush1.msra.mxu0 %v54
  %199 = vmatprep.subr.mxu0 %v59
  %200 = vmatpush1.msra.mxu0 %v58
  %201 = vmatprep.subr.mxu0 %v63
  %202 = vmatpush1.msra.mxu0 %v62
  %203 = vmatprep.subr.mxu0 %v67
  %204 = vmatpush1.msra.mxu0 %v66
  %205 = vmatprep.subr.mxu0 %v71
  %206 = vmatpush1.msra.mxu0 %v70
  %207 = vmatprep.subr.mxu0 %v75
  %208 = vmatpush1.msra.mxu0 %v74
  %209 = vmatprep.subr.mxu0 %v79
  %210 = vmatpush1.msra.mxu0 %v78
  %211 = vmatprep.subr.mxu0 0.0
  %212 = vmatpush1.msra.mxu0 0.0
  %213 = vmatprep.subr.mxu0 0.0
  %214 = vmatpush1.msra.mxu0 0.0
  %215 = vmatprep.subr.mxu0 0.0
  %216 = vmatpush1.msra.mxu0 0.0
  %217 = vmatprep.subr.mxu0 0.0
  %218 = vmatpush1.msra.mxu0 0.0
  %219 = vmatprep.subr.mxu0 0.0
  %220 = vmatpush1.msra.mxu0 0.0
  %221 = vmatprep.subr.mxu0 0.0
  %222 = vmatpush1.msra.mxu0 0.0
  %223 = vmatprep.subr.mxu0 0.0
  %224 = vmatpush1.msra.mxu0 0.0
  %225 = vmatprep.subr.mxu0 0.0
  %226 = vmatpush1.msra.mxu0 0.0
  %227 = vmatprep.subr.mxu0 0.0
  %228 = vmatpush1.msra.mxu0 0.0
  %229 = vmatprep.subr.mxu0 0.0
  %230 = vmatpush1.msra.mxu0 0.0
  %231 = vmatprep.subr.mxu0 0.0
  %232 = vmatpush1.msra.mxu0 0.0
  %233 = vmatprep.subr.mxu0 0.0
  %234 = vmatpush1.msra.mxu0 0.0
  %235 = vmatprep.subr.mxu0 0.0
  %236 = vmatpush1.msra.mxu0 0.0
  %237 = vmatprep.subr.mxu0 0.0
  %238 = vmatpush1.msra.mxu0 0.0
  %239 = vmatprep.subr.mxu0 0.0
  %240 = vmatpush1.msra.mxu0 0.0
  %241 = vmatprep.subr.mxu0 0.0
  %242 = vmatpush1.msra.mxu0 0.0
  %243 = vmatprep.mubr.f32.mxu0 0.0
  %244 = vmatmul.mubr.f32.gmra.mrb[0].mxu0 %v14
  %v245 = vpop.f32.mrb[0].mxu0
  %v246 = vadd.f32 %v93, %v245
  %v247 = vpop.f32.mrb[0].mxu0
  %v248 = vadd.f32 %v97, %v247
  %249 = vmatprep.mubr.f32.mxu0 0.0
  %250 = vmatmul.mubr.f32.gmra.mrb[0].mxu0 %v15
  %v251 = vpop.f32.mrb[0].mxu0
  %v252 = vadd.f32 %v93, %v251
  %v253 = vpop.f32.mrb[0].mxu0
  %v254 = vadd.f32 %v97, %v253
  %255 = vdwg.mxu0
  %256 = vst [vmem:[%s3] sm:$0xff] %v169
  %257 = vst [vmem:[%s3 + $0x8] sm:$0xff] %v171
  %258 = vst [vmem:[%s3 + $0x10] sm:$0xff] %v246
  %259 = vst [vmem:[%s3 + $0x18] sm:$0xff] %v248
  %260 = vst [vmem:[%s3 + $0x20] sm:$0x1f] %v175
  %261 = vst [vmem:[%s3 + $0x28] sm:$0x1f] %v177
  %262 = vst [vmem:[%s3 + $0x30] sm:$0x1f] %v252
  %263 = vst [vmem:[%s3 + $0x38] sm:$0x1f] %v254
  // Predicated region
  $region14: #{linear_edge_encoder.1} parent=0 // pred_check
    _
  $region15: #{linear_edge_encoder.1} parent=0 // pred_check_branch
    %265 = sbr.rel (0) target = $region17
  $region16: #{linear_edge_encoder.1} parent=0 // pred_region
    _
  $region17: #{linear_edge_encoder.1} parent=0 // pred_fallthru
    _
  // Predicated region
  $region18: #{linear_edge_encoder.1} parent=0 // pred_check
    _
  $region19: #{linear_edge_encoder.1} parent=0 // pred_check_branch
    %267 = sbr.rel (0) target = $region21
  $region20: #{linear_edge_encoder.1} parent=0 // pred_region
    _
  $region21: #{linear_edge_encoder.1} parent=0 // pred_fallthru
    _

</llo_original>
